<compile_context>
chip_gen: v7x
topology: tpu7x:2x2x1
jax: 0.10.0
libtpu: 0.0.40
codegen_flags: <defaults>
</compile_context>

<pallas_src>
import functools

import jax
import jax.numpy as jnp
from jax import lax
from jax.experimental import pallas as pl
from jax.experimental.pallas import tpu as pltpu


# ---------------------------------------------------------------------------
# Small helpers (traced inside kernels).
# ---------------------------------------------------------------------------
def _apply_act(z, act, neg_slope=0.01):
    if act == "leaky":
        return jnp.where(z > 0, z, neg_slope * z)
    if act == "relu":
        return jnp.maximum(z, 0.0)
    return z


# ---------------------------------------------------------------------------
# Kernel 1: 1x1 conv (+ per-channel affine + activation), lane-dense over H*W.
# ---------------------------------------------------------------------------
def _conv1x1_kernel(x_ref, w_ref, scale_ref, shift_ref, o_ref, *, act):
    # x_ref: (C_in, THW)  w_ref: (C_out, C_in)  scale/shift: (C_out, 1)
    acc = jnp.dot(w_ref[...], x_ref[...], preferred_element_type=jnp.float32)
    z = acc * scale_ref[...] + shift_ref[...]
    o_ref[...] = _apply_act(z, act).astype(o_ref.dtype)


@functools.lru_cache(maxsize=None)
def _build_conv1x1(n, cin, cout, hw, act, dtype):
    thw = hw if hw <= 512 else 512  # lane-dense tile (multiple of 128 when tiling)
    grid = (n, pl.cdiv(hw, thw))
    return pl.pallas_call(
        functools.partial(_conv1x1_kernel, act=act),
        out_shape=jax.ShapeDtypeStruct((n, cout, hw), dtype),
        grid_spec=pltpu.PrefetchScalarGridSpec(
            num_scalar_prefetch=0,
            grid=grid,
            in_specs=[
                pl.BlockSpec((None, cin, thw), lambda i, t: (i, 0, t)),
                pl.BlockSpec((cout, cin), lambda i, t: (0, 0)),
                pl.BlockSpec((cout, 1), lambda i, t: (0, 0)),
                pl.BlockSpec((cout, 1), lambda i, t: (0, 0)),
            ],
            out_specs=pl.BlockSpec((None, cout, thw), lambda i, t: (i, 0, t)),
        ),
        compiler_params=pltpu.CompilerParams(
            dimension_semantics=("parallel", "parallel")),
    )


def conv1x1(x, w, scale, shift, act="none"):
    """nn.Conv2d(cin, cout, 1) [+ folded BN + activation]."""
    n, cin, h, wd = x.shape
    cout = w.shape[0]
    hw = h * wd
    fn = _build_conv1x1(n, cin, cout, hw, act, x.dtype)
    out = fn(x.reshape(n, cin, hw), w.astype(x.dtype), scale, shift)
    return out.reshape(n, cout, h, wd)


# ---------------------------------------------------------------------------
# Kernel 2: standalone per-channel affine (the inconv input BatchNorm).
# ---------------------------------------------------------------------------
def _affine_kernel(x_ref, scale_ref, shift_ref, o_ref, *, act):
    z = x_ref[...].astype(jnp.float32) * scale_ref[...] + shift_ref[...]
    o_ref[...] = _apply_act(z, act).astype(o_ref.dtype)


@functools.lru_cache(maxsize=None)
def _build_affine(n, c, hw, act, dtype):
    thw = hw if hw <= 1024 else 1024
    grid = (n, pl.cdiv(hw, thw))
    return pl.pallas_call(
        functools.partial(_affine_kernel, act=act),
        out_shape=jax.ShapeDtypeStruct((n, c, hw), dtype),
        grid_spec=pltpu.PrefetchScalarGridSpec(
            num_scalar_prefetch=0,
            grid=grid,
            in_specs=[
                pl.BlockSpec((None, c, thw), lambda i, t: (i, 0, t)),
                pl.BlockSpec((c, 1), lambda i, t: (0, 0)),
                pl.BlockSpec((c, 1), lambda i, t: (0, 0)),
            ],
            out_specs=pl.BlockSpec((None, c, thw), lambda i, t: (i, 0, t)),
        ),
        compiler_params=pltpu.CompilerParams(
            dimension_semantics=("parallel", "parallel")),
    )


def channel_affine(x, scale, shift, act="none"):
    n, c, h, w = x.shape
    hw = h * w
    fn = _build_affine(n, c, hw, act, x.dtype)
    return fn(x.reshape(n, c, hw), scale, shift).reshape(n, c, h, w)


# ---------------------------------------------------------------------------
# Kernel 3: 3x3 conv (zero pad=1) + folded-BN affine + activation.
#
# Input is pre-flattened in the wrapper to (C_in, (H+2)*W + 2): one zero row of
# padding above/below plus one extra zero element front/back so every tap
# (dy, dx) is the contiguous slice [dy*W + dx : dy*W + dx + H*W).  The dx=0 /
# dx=2 taps are masked on the lanes that correspond to the left / right image
# border.  9 MXU matmuls (C_out, C_in) x (C_in, H*W) accumulate in f32.
# ---------------------------------------------------------------------------
def _conv3x3_kernel(x_ref, w_ref, scale_ref, shift_ref, o_ref, *,
                    H, W, act, neg_slope):
    HW = H * W
    col = lax.broadcasted_iota(jnp.int32, (1, HW), 1) % W
    cout = o_ref.shape[0]
    acc = jnp.zeros((cout, HW), jnp.float32)
    for dx in range(3):
        part = jnp.zeros((cout, HW), jnp.float32)
        for dy in range(3):
            off = dy * W + dx
            patch = x_ref[:, off:off + HW]            # (C_in, HW) shifted view
            part = part + jnp.dot(w_ref[dy * 3 + dx], patch,
                                  preferred_element_type=jnp.float32)
        if dx == 0:
            part = jnp.where(col != 0, part, 0.0)      # no left neighbour at w=0
        elif dx == 2:
            part = jnp.where(col != W - 1, part, 0.0)  # no right neighbour at w=W-1
        acc = acc + part
    z = acc * scale_ref[...] + shift_ref[...]
    o_ref[...] = _apply_act(z, act, neg_slope).astype(o_ref.dtype)


@functools.lru_cache(maxsize=None)
def _build_conv3x3(n, cin, cout, H, W, act, neg_slope, dtype):
    HW = H * W
    Lf = (H + 2) * W + 2
    # TODO(synk): full-spatial blocks per image (grid over N only); production
    # BEV sizes would tile H*W with a halo (manual DMA / emit_pipeline).
    return pl.pallas_call(
        functools.partial(_conv3x3_kernel, H=H, W=W, act=act,
                          neg_slope=neg_slope),
        out_shape=jax.ShapeDtypeStruct((n, cout, HW), dtype),
        grid_spec=pltpu.PrefetchScalarGridSpec(
            num_scalar_prefetch=0,
            grid=(n,),
            in_specs=[
                pl.BlockSpec((None, cin, Lf), lambda i: (i, 0, 0)),
                pl.BlockSpec((9, cout, cin), lambda i: (0, 0, 0)),
                pl.BlockSpec((cout, 1), lambda i: (0, 0)),
                pl.BlockSpec((cout, 1), lambda i: (0, 0)),
            ],
            out_specs=pl.BlockSpec((None, cout, HW), lambda i: (i, 0, 0)),
        ),
        compiler_params=pltpu.CompilerParams(dimension_semantics=("parallel",)),
    )


def conv3x3_bn_act(x, w, scale, shift, act="leaky", neg_slope=0.01):
    """nn.Conv2d(cin, cout, 3, padding=1) + folded BN + activation."""
    n, cin, H, W = x.shape
    cout = w.shape[0]
    xp = jnp.pad(x, ((0, 0), (0, 0), (1, 1), (0, 0)))           # zero rows top/bottom
    xf = jnp.pad(xp.reshape(n, cin, (H + 2) * W), ((0, 0), (0, 0), (1, 1)))
    w9 = jnp.transpose(w, (2, 3, 0, 1)).reshape(9, cout, cin).astype(x.dtype)
    fn = _build_conv3x3(n, cin, cout, H, W, act, neg_slope, x.dtype)
    out = fn(xf, w9, scale, shift)
    return out.reshape(n, cout, H, W)


# ---------------------------------------------------------------------------
# Kernel 4: fused BEVFusion tail.
#   For each of the 4 streams: AdaptiveAvgPool2d(1) -> 1x1 conv -> Sigmoid,
#   then out = sum_s feat_s * attn_s.  One pass over the feature maps.
# ---------------------------------------------------------------------------
def _bev_fusion_kernel(bev_ref, sem_ref, com_ref, img_ref, w_ref, b_ref, o_ref):
    hw = bev_ref.shape[-1]
    inv_hw = 1.0 / hw
    acc = jnp.zeros(o_ref.shape, jnp.float32)
    refs = (bev_ref, sem_ref, com_ref, img_ref)
    for s in range(4):
        feat = refs[s][...].astype(jnp.float32)                      # (C, HW)
        pooled = jnp.sum(feat, axis=-1, keepdims=True) * inv_hw      # (C, 1)
        logit = jnp.dot(w_ref[s], pooled,
                        preferred_element_type=jnp.float32) + b_ref[s]
        attn = 1.0 / (1.0 + jnp.exp(-logit))                         # sigmoid
        acc = acc + feat * attn
    o_ref[...] = acc.astype(o_ref.dtype)


@functools.lru_cache(maxsize=None)
def _build_bev_fusion(n, c, hw, dtype):
    feat_spec = pl.BlockSpec((None, c, hw), lambda i: (i, 0, 0))
    return pl.pallas_call(
        _bev_fusion_kernel,
        out_shape=jax.ShapeDtypeStruct((n, c, hw), dtype),
        grid_spec=pltpu.PrefetchScalarGridSpec(
            num_scalar_prefetch=0,
            grid=(n,),
            in_specs=[feat_spec, feat_spec, feat_spec, feat_spec,
                      pl.BlockSpec((4, c, c), lambda i: (0, 0, 0)),
                      pl.BlockSpec((4, c, 1), lambda i: (0, 0, 0))],
            out_specs=pl.BlockSpec((None, c, hw), lambda i: (i, 0, 0)),
        ),
        compiler_params=pltpu.CompilerParams(dimension_semantics=("parallel",)),
    )


# ---------------------------------------------------------------------------
# Wrapper-side glue ops (plain JAX / XLA).
# ---------------------------------------------------------------------------
def _interp_matrix_align_corners(n_in, n_out, dtype=jnp.float32):
    if n_in == 1:
        return jnp.ones((n_out, 1), dtype)
    pos = jnp.arange(n_out, dtype=jnp.float32) * (n_in - 1) / (n_out - 1)
    lo = jnp.minimum(jnp.floor(pos).astype(jnp.int32), n_in - 2)
    frac = pos - lo.astype(jnp.float32)
    m = (jax.nn.one_hot(lo, n_in) * (1.0 - frac)[:, None]
         + jax.nn.one_hot(lo + 1, n_in) * frac[:, None])
    return m.astype(dtype)


def upsample2x_bilinear_align(x):
    # TODO(synk): nn.Upsample(scale_factor=2, bilinear, align_corners=True) kept
    # in plain JAX (two tiny interpolation matmuls); not a Pallas kernel.
    n, c, h, w = x.shape
    mh = _interp_matrix_align_corners(h, 2 * h, x.dtype)
    mw = _interp_matrix_align_corners(w, 2 * w, x.dtype)
    return jnp.einsum("ih,jw,nchw->ncij", mh, mw, x)


def maxpool2x2(x):
    # TODO(synk): nn.MaxPool2d(2) kept as an XLA reshape+max in the wrapper.
    n, c, h, w = x.shape
    return jnp.max(x.reshape(n, c, h // 2, 2, w // 2, 2), axis=(3, 5))


# ---------------------------------------------------------------------------
# Parameter construction (synthetic, deterministic) and BN folding.
# ---------------------------------------------------------------------------
def _init_conv(key, cout, cin, k, bias=True):
    kw, kb = jax.random.split(key)
    fan_in = cin * k * k
    bound = (6.0 / fan_in) ** 0.5
    w = jax.random.uniform(kw, (cout, cin, k, k), jnp.float32, -bound, bound)
    b = (jax.random.uniform(kb, (cout,), jnp.float32, -bound, bound)
         if bias else None)
    return w, b


def _init_bn(key, c):
    k1, k2, k3, k4 = jax.random.split(key, 4)
    return dict(
        gamma=jax.random.uniform(k1, (c,), jnp.float32, 0.5, 1.5),
        beta=jax.random.uniform(k2, (c,), jnp.float32, -0.1, 0.1),
        mean=jax.random.normal(k3, (c,), jnp.float32) * 0.1,
        var=jax.random.uniform(k4, (c,), jnp.float32, 0.5, 1.5),
    )


def _fold_bn(bn, conv_bias=None, eps=1e-5):
    s = bn["gamma"] / jnp.sqrt(bn["var"] + eps)
    t = bn["beta"] - bn["mean"] * s
    if conv_bias is not None:
        t = t + conv_bias * s
    return s.reshape(-1, 1), t.reshape(-1, 1)


def _init_double_conv(key, cin, cout):
    ks = jax.random.split(key, 4)
    w1, b1 = _init_conv(ks[0], cout, cin, 3)
    w2, b2 = _init_conv(ks[1], cout, cout, 3)
    return dict(w1=w1, b1=b1, bn1=_init_bn(ks[2], cout),
                w2=w2, b2=b2, bn2=_init_bn(ks[3], cout))


def double_conv_apply(p, x):
    s1, t1 = _fold_bn(p["bn1"], p["b1"])
    x = conv3x3_bn_act(x, p["w1"], s1, t1, act="leaky")
    s2, t2 = _fold_bn(p["bn2"], p["b2"])
    return conv3x3_bn_act(x, p["w2"], s2, t2, act="leaky")


def _init_inconv(key, cin, cout):
    k1, k2 = jax.random.split(key)
    return dict(bn0=_init_bn(k1, cin), dc=_init_double_conv(k2, cin, cout))


def inconv_apply(p, x):
    s0, t0 = _fold_bn(p["bn0"])
    x = channel_affine(x, s0, t0)           # input BatchNorm
    return double_conv_apply(p["dc"], x)


def down_apply(p, x):
    return double_conv_apply(p["dc"], maxpool2x2(x))


def up_apply(p, x1, x2):
    x1u = upsample2x_bilinear_align(x1)
    dy = x2.shape[2] - x1u.shape[2]
    dx = x2.shape[3] - x1u.shape[3]
    if dy or dx:
        x1u = jnp.pad(x1u, ((0, 0), (0, 0),
                            (dy // 2, dy - dy // 2), (dx // 2, dx - dx // 2)))
    x = jnp.concatenate([x2, x1u], axis=1)   # cat([skip, upsampled], dim=1)
    return double_conv_apply(p["dc"], x)


def _init_bev_fusion(key, channel):
    ks = jax.random.split(key, 6)
    ws, bs = _init_conv(ks[0], channel, channel // 2, 1)
    wc, bc = _init_conv(ks[1], channel, channel // 2, 1)
    wi3, _ = _init_conv(ks[2], channel, channel, 3, bias=False)
    bn_i = _init_bn(ks[3], channel)
    wi1, bi1 = _init_conv(ks[4], channel, channel, 1)
    aw, ab = [], []
    for k in jax.random.split(ks[5], 4):      # order: bev, sem, com, img
        w, b = _init_conv(k, channel, channel, 1)
        aw.append(w.reshape(channel, channel))
        ab.append(b.reshape(channel, 1))
    return dict(sem_w=ws.reshape(channel, channel // 2), sem_b=bs,
                com_w=wc.reshape(channel, channel // 2), com_b=bc,
                img_w3=wi3, img_bn=bn_i,
                img_w1=wi1.reshape(channel, channel), img_b1=bi1,
                attn_w=jnp.stack(aw), attn_b=jnp.stack(ab))


def bev_fusion_apply(p, bev, sem, com, img):
    c = bev.shape[1]
    ones = jnp.ones((c, 1), jnp.float32)
    sem_a = conv1x1(sem, p["sem_w"], ones, p["sem_b"].reshape(-1, 1))
    com_a = conv1x1(com, p["com_w"], ones, p["com_b"].reshape(-1, 1))
    # adapter_img: Upsample x2 -> Conv3x3(no bias)+BN+ReLU -> Conv1x1
    img_u = upsample2x_bilinear_align(img)
    s3, t3 = _fold_bn(p["img_bn"])
    img_c = conv3x3_bn_act(img_u, p["img_w3"], s3, t3, act="relu")
    img_a = conv1x1(img_c, p["img_w1"], ones, p["img_b1"].reshape(-1, 1))
    n, _, h, w = bev.shape
    hw = h * w
    fn = _build_bev_fusion(n, c, hw, bev.dtype)
    out = fn(bev.reshape(n, c, hw), sem_a.reshape(n, c, hw),
             com_a.reshape(n, c, hw), img_a.reshape(n, c, hw),
             p["attn_w"], p["attn_b"])
    return out.reshape(n, c, h, w)


def init_bevunet(key, n_class, n_height, base=8):
    # base=64 reproduces the real widths [64,128,256,512,512]; scaled for demo.
    c = [base, 2 * base, 4 * base, 8 * base, 8 * base]
    ks = jax.random.split(key, 13)
    return dict(
        inc=_init_inconv(ks[0], n_height * 2, c[0]),
        down1=dict(dc=_init_double_conv(ks[1], c[0], c[1])),
        down2=dict(dc=_init_double_conv(ks[2], c[1], c[2])),
        down3=dict(dc=_init_double_conv(ks[3], c[2], c[3])),
        down4=dict(dc=_init_double_conv(ks[4], c[3], c[4])),
        up1=dict(dc=_init_double_conv(ks[5], c[3] + c[4], c[3])),
        up2=dict(dc=_init_double_conv(ks[6], c[2] + c[3], c[2])),
        up3=dict(dc=_init_double_conv(ks[7], c[1] + c[2], c[1])),
        up4=dict(dc=_init_double_conv(ks[8], c[0] + c[1], c[1])),
        outc=_init_conv(ks[9], n_class, c[1], 1),
        fusions=[_init_bev_fusion(ks[10 + i], c[1 + i]) for i in range(3)],
    )


def bevunet_forward(params, x, sem_list, com_list, img_list,
                    n_height, nbr_classes):
    x1 = inconv_apply(params["inc"], x)
    x2 = down_apply(params["down1"], x1)
    x2f = bev_fusion_apply(params["fusions"][0], x2,
                           sem_list[0], com_list[0], img_list[0])
    x3 = down_apply(params["down2"], x2f)
    x3f = bev_fusion_apply(params["fusions"][1], x3,
                           sem_list[1], com_list[1], img_list[1])
    x4 = down_apply(params["down3"], x3f)
    x4f = bev_fusion_apply(params["fusions"][2], x4,
                           sem_list[2], com_list[2], img_list[2])
    x5 = down_apply(params["down4"], x4f)
    h = up_apply(params["up1"], x5, x4f)
    h = up_apply(params["up2"], h, x3f)
    h = up_apply(params["up3"], h, x2f)
    h = up_apply(params["up4"], h, x1)
    # TODO(synk): nn.Dropout(p) is identity in eval mode; skipped.
    w_o, b_o = params["outc"]
    cout = w_o.shape[0]
    h = conv1x1(h, w_o.reshape(cout, -1), jnp.ones((cout, 1), jnp.float32),
                b_o.reshape(-1, 1))
    n, _, H, W = h.shape
    h = h.reshape(n, nbr_classes, n_height, H, W)
    h = jnp.transpose(h, (0, 1, 4, 3, 2))
    return h, [x2f, x3f, x4f, x5], None


# ---------------------------------------------------------------------------
# Pure-JAX reference (mirrors the PyTorch module) for validation.
# ---------------------------------------------------------------------------
def _ref_conv(x, w, b, pad):
    out = lax.conv_general_dilated(x, w, (1, 1), [(pad, pad), (pad, pad)],
                                   dimension_numbers=("NCHW", "OIHW", "NCHW"))
    return out if b is None else out + b[None, :, None, None]


def _ref_bn(x, bn, eps=1e-5):
    s = bn["gamma"] / jnp.sqrt(bn["var"] + eps)
    return ((x - bn["mean"][None, :, None, None]) * s[None, :, None, None]
            + bn["beta"][None, :, None, None])


def _ref_leaky(x):
    return jnp.where(x > 0, x, 0.01 * x)


def _ref_double_conv(p, x):
    x = _ref_leaky(_ref_bn(_ref_conv(x, p["w1"], p["b1"], 1), p["bn1"]))
    return _ref_leaky(_ref_bn(_ref_conv(x, p["w2"], p["b2"], 1), p["bn2"]))


def _ref_conv1x1(x, w, b):
    out = jnp.einsum("oc,nchw->nohw", w, x)
    return out if b is None else out + b[None, :, None, None]


def _ref_bev_fusion(p, bev, sem, com, img):
    sem_a = _ref_conv1x1(sem, p["sem_w"], p["sem_b"])
    com_a = _ref_conv1x1(com, p["com_w"], p["com_b"])
    img_u = upsample2x_bilinear_align(img)
    img_c = jnp.maximum(_ref_bn(_ref_conv(img_u, p["img_w3"], None, 1),
                                p["img_bn"]), 0.0)
    img_a = _ref_conv1x1(img_c, p["img_w1"], p["img_b1"])
    feats = [bev, sem_a, com_a, img_a]
    out = jnp.zeros_like(bev)
    for s in range(4):
        pooled = jnp.mean(feats[s], axis=(2, 3), keepdims=True)
        logit = (jnp.einsum("oc,ncij->noij", p["attn_w"][s], pooled)
                 + p["attn_b"][s].reshape(1, -1, 1, 1))
        out = out + feats[s] * jax.nn.sigmoid(logit)
    return out


def bevunet_forward_ref(params, x, sem_list, com_list, img_list,
                        n_height, nbr_classes):
    x1 = _ref_double_conv(params["inc"]["dc"], _ref_bn(x, params["inc"]["bn0"]))
    x2 = _ref_double_conv(params["down1"]["dc"], maxpool2x2(x1))
    x2f = _ref_bev_fusion(params["fusions"][0], x2,
                          sem_list[0], com_list[0], img_list[0])
    x3 = _ref_double_conv(params["down2"]["dc"], maxpool2x2(x2f))
    x3f = _ref_bev_fusion(params["fusions"][1], x3,
                          sem_list[1], com_list[1], img_list[1])
    x4 = _ref_double_conv(params["down3"]["dc"], maxpool2x2(x3f))
    x4f = _ref_bev_fusion(params["fusions"][2], x4,
                          sem_list[2], com_list[2], img_list[2])
    x5 = _ref_double_conv(params["down4"]["dc"], maxpool2x2(x4f))

    def ref_up(p, a, skip):
        return _ref_double_conv(p["dc"], jnp.concatenate(
            [skip, upsample2x_bilinear_align(a)], axis=1))

    h = ref_up(params["up1"], x5, x4f)
    h = ref_up(params["up2"], h, x3f)
    h = ref_up(params["up3"], h, x2f)
    h = ref_up(params["up4"], h, x1)
    w_o, b_o = params["outc"]
    h = _ref_conv1x1(h, w_o.reshape(w_o.shape[0], -1), b_o)
    n, _, H, W = h.shape
    h = h.reshape(n, nbr_classes, n_height, H, W)
    return jnp.transpose(h, (0, 1, 4, 3, 2)), [x2f, x3f, x4f, x5], None


# ---------------------------------------------------------------------------
# Demo / validation.
# ---------------------------------------------------------------------------
if __name__ == "__main__":
    key = jax.random.PRNGKey(0)
    kp, kx, ks, kc, ki = jax.random.split(key, 5)

    N, H, W = 2, 32, 32
    n_height, nbr_classes = 4, 5
    n_class = nbr_classes * n_height            # 20
    base = 8                                    # real net uses base=64
    fusion_chans = [2 * base, 4 * base, 8 * base]

    params = init_bevunet(kp, n_class, n_height, base=base)

    x = jax.random.normal(kx, (N, n_height * 2, H, W), jnp.float32)
    sem_list, com_list, img_list = [], [], []
    for i, c in enumerate(fusion_chans):
        hs = H // (2 ** (i + 1))                # bev spatial at this level
        sem_list.append(jax.random.normal(jax.random.fold_in(ks, i),
                                          (N, c // 2, hs, hs), jnp.float32))
        com_list.append(jax.random.normal(jax.random.fold_in(kc, i),
                                          (N, c // 2, hs, hs), jnp.float32))
        img_list.append(jax.random.normal(jax.random.fold_in(ki, i),
                                          (N, c, hs // 2, hs // 2), jnp.float32))

    out, feats, _ = bevunet_forward(params, x, sem_list, com_list, img_list,
                                    n_height, nbr_classes)
    jax.block_until_ready(out)

    ref_out, ref_feats, _ = bevunet_forward_ref(params, x, sem_list, com_list,
                                                img_list, n_height, nbr_classes)

    assert out.shape == (N, nbr_classes, W, H, n_height), out.shape
    TOL = 0.1  # normalized max-error; real bugs produce O(1) mismatches
    err = float(jnp.max(jnp.abs(out - ref_out)) / (jnp.max(jnp.abs(ref_out)) + 1e-6))
    assert err < TOL, f"final output mismatch: rel-max-err={err:.4f}"
    for idx, (a, b) in enumerate(zip(feats, ref_feats)):
        e = float(jnp.max(jnp.abs(a - b)) / (jnp.max(jnp.abs(b)) + 1e-6))
        assert e < TOL, f"aux feature {idx} mismatch: rel-max-err={e:.4f}"

    print("KERNEL_OK")
</pallas_src>

<mosaic_0001>
module attributes {stable_mosaic.version = 11 : i64} {
  func.func @_affine_kernel(%arg0: i32, %arg1: i32, %arg2: memref<1x8x1024xf32, #tpu.memory_space<vmem>>, %arg3: memref<8x1xf32, #tpu.memory_space<vmem>>, %arg4: memref<8x1xf32, #tpu.memory_space<vmem>>, %arg5: memref<1x8x1024xf32, #tpu.memory_space<vmem>>) attributes {dimension_semantics = [#tpu.dimension_semantics<parallel>, #tpu.dimension_semantics<parallel>], iteration_bounds = array<i64: 2, 1>, scalar_prefetch = 0 : i64, scratch_operands = 0 : i64, tpu.core_type = #tpu.core_type<tc>, window_params = [{transform_indices = @transform_0, window_bounds = array<i64: 1, 8, 1024>}, {pipeline_mode = #tpu.pipeline_mode<synchronous>, transform_indices = @transform_1, window_bounds = array<i64: 8, 1>}, {pipeline_mode = #tpu.pipeline_mode<synchronous>, transform_indices = @transform_2, window_bounds = array<i64: 8, 1>}, {transform_indices = @transform_3, window_bounds = array<i64: 1, 8, 1024>}]} {
    %c0 = arith.constant 0 : index
    %c0_0 = arith.constant 0 : index
    %c0_1 = arith.constant 0 : index
    %0 = vector.load %arg2[%c0, %c0_0, %c0_1] : memref<1x8x1024xf32, #tpu.memory_space<vmem>>, vector<1x8x1024xf32>
    %1 = vector.shape_cast %0 : vector<1x8x1024xf32> to vector<8x1024xf32>
    %c0_2 = arith.constant 0 : index
    %c0_3 = arith.constant 0 : index
    %2 = vector.load %arg3[%c0_2, %c0_3] : memref<8x1xf32, #tpu.memory_space<vmem>>, vector<8x1xf32>
    %3 = vector.broadcast %2 : vector<8x1xf32> to vector<8x1024xf32>
    %4 = arith.mulf %1, %3 : vector<8x1024xf32>
    %c0_4 = arith.constant 0 : index
    %c0_5 = arith.constant 0 : index
    %5 = vector.load %arg4[%c0_4, %c0_5] : memref<8x1xf32, #tpu.memory_space<vmem>>, vector<8x1xf32>
    %6 = vector.broadcast %5 : vector<8x1xf32> to vector<8x1024xf32>
    %7 = arith.addf %4, %6 : vector<8x1024xf32>
    %c0_6 = arith.constant 0 : index
    %c0_7 = arith.constant 0 : index
    %c0_8 = arith.constant 0 : index
    %8 = vector.load %arg5[%c0_6, %c0_7, %c0_8] : memref<1x8x1024xf32, #tpu.memory_space<vmem>>, vector<1x8x1024xf32>
    %9 = vector.shape_cast %8 : vector<1x8x1024xf32> to vector<8x1024xf32>
    %10 = vector.shape_cast %7 : vector<8x1024xf32> to vector<1x8x1024xf32>
    tpu.vector_store %arg5[%c0_6, %c0_7, %c0_8], %10 {strides = array<i32>} : memref<1x8x1024xf32, #tpu.memory_space<vmem>>, vector<1x8x1024xf32>,
    return
  }
  func.func @transform_0(%arg0: i32, %arg1: i32) -> (i32, i32, i32) {
    %c0_i32 = arith.constant 0 : i32
    %c0_i32_0 = arith.constant 0 : i32
    return %arg0, %c0_i32, %arg1 : i32, i32, i32
  }
  func.func @transform_1(%arg0: i32, %arg1: i32) -> (i32, i32) {
    %c0_i32 = arith.constant 0 : i32
    %c0_i32_0 = arith.constant 0 : i32
    %c0_i32_1 = arith.constant 0 : i32
    return %c0_i32, %c0_i32_0 : i32, i32
  }
  func.func @transform_2(%arg0: i32, %arg1: i32) -> (i32, i32) {
    %c0_i32 = arith.constant 0 : i32
    %c0_i32_0 = arith.constant 0 : i32
    %c0_i32_1 = arith.constant 0 : i32
    return %c0_i32, %c0_i32_0 : i32, i32
  }
  func.func @transform_3(%arg0: i32, %arg1: i32) -> (i32, i32, i32) {
    %c0_i32 = arith.constant 0 : i32
    %c0_i32_0 = arith.constant 0 : i32
    return %arg0, %c0_i32, %arg1 : i32, i32, i32
  }
}

</mosaic_0001>

<llo_original>
// kernel: tpu_custom_call.1
$region0: #{tpu_custom_call.1}
  #allocation0 [shape = 'u32[]', space=smem, size = 0x4, offset = 0x4, fixed_abs, tag = 'smem constant byte address 0x4 - core index']
  #allocation1 [shape = 'u32[144,128]{1,0:T(1,128)}', space=vmem, size = 0x12000, scoped, tag = 'internal scratch']
  %s0 = inlined_call_operand.hbm [shape: f32[2,8,1024], index: 0, kind: input, shape index: {}]
  %s1 = inlined_call_operand.vmem [shape: f32[8,1], index: 1, kind: input, shape index: {}]
  %s2 = inlined_call_operand.vmem [shape: f32[8,1], index: 2, kind: input, shape index: {}]
  %s3 = inlined_call_operand.hbm [shape: f32[2,8,1024], index: 3, kind: output, shape index: {}]
  %s4 = sld [smem:[#allocation0]]
  $region49: #{tpu_custom_call.1} parent=0
    _
  %s6 = ssub.s32 1, %s4
  %s7 = scalar_select 0, %s6, %s4
  $region1: #{tpu_custom_call.1} parent=0
    #allocation2 [shape = 'u8[65536]{0}', space=vmem, size = 0x10000, scoped, tag = 'input window, operand 0']
    #allocation3 [shape = 's32[2]{0}', space=sflag, size = 0x8, scoped, tag = 'scoped memory for tpu_custom_call.1']
    #allocation4 [shape = 's32[2]{0}', space=sflag, size = 0x8, scoped, tag = 'scoped memory for tpu_custom_call.1']
    #allocation5 [shape = 'u8[65536]{0}', space=vmem, size = 0x10000, scoped, tag = 'output window, operand 0']
    %8 = vsyncpa [#allocation3], 0
    %s9 = scalar_lea.sflag [#allocation3], 1
    %10 = vsyncpa %s9, 0
    %11 = vsyncpa [#allocation4], 0
    %s12 = scalar_lea.sflag [#allocation4], 1
    %13 = vsyncpa %s12, 0
    loop: start=0, step=1, limit=4
    $region2: #{tpu_custom_call.1} parent=1 // loop_pre_header
      _
    $region3: #{tpu_custom_call.1} parent=1 // loop_header
      %s15 = sphi 0, %s19
      %p16 = scmp.ge.s32.totalorder %s15, 4
      %s22 = sphi 0, %s34
      %s23 = sphi 0, %s30
      %s24 = sphi 0, %s22
      %s25 = sphi 0, %s23
      %s26 = sphi 0, %s24
      %s27 = sphi 0, %s25
      %s39 = sphi 0, %s41
      %s42 = sphi 0, %s39
      %s43 = sphi 0, %s42
      %s59 = sphi 0, %s43
      %s63 = sphi 0, %s63
      %s65 = sphi 0, %s63
      %s66 = sphi 0, %s65
      %s80 = sphi 0, %s66
      %s84 = sphi 0, %s84
      %s86 = sphi 0, %s84
      %s87 = sphi 0, %s86
      %s101 = sphi 0, %s87
      %s109 = sphi 0, %s111
      %s112 = sphi 0, %s109
      %s113 = sphi 0, %s112
      %s129 = sphi 0, %s113
    $region4: #{tpu_custom_call.1} parent=1 // loop_header_branch
      %18 = sbr.rel (%p16) target = $region8
    $region5: #{tpu_custom_call.1} parent=1 // loop_body
      %s20 = ssub.s32 %s15, 1
      %s21 = ssub.s32 %s15, 2
      %s28 = sadd.s32 1, %s23
      %p29 = scmp.ge.s32.totalorder %s28, 1
      %s30 = scalar_select %p29, 0, %s28
      %s31 = sadd.s32 1, %s22
      %s32 = scalar_select %p29, %s31, %s22
      %p33 = scmp.ge.s32.totalorder %s32, 2
      %s34 = scalar_select %p33, 0, %s32
      %s35 = ssub.s32 %s22, %s34
      %s36 = ssub.s32 %s23, %s30
      %s37 = sor.u32 %s35, %s36
      %p38 = scmp.eq.s32.totalorder %s37, 0
      %s40 = sadd.s32 %s39, 1
      %s41 = scalar_select %p38, %s39, %s40
      %p44 = pneg %p38
      %p45 = scmp.eq.s32.totalorder %s15, 1
      %p46 = por %p44, %p45
      %p47 = scmp.ne.s32.totalorder %s39, %s42
      %p48 = scmp.eq.s32.totalorder %s15, 0
      %p49 = por %p47, %p48
      %p50 = scmp.ne.s32.totalorder %s39, %s42
      %p51 = scmp.eq.s32.totalorder %s20, 1
      %p52 = por %p50, %p51
      %p53 = scmp.ne.s32.totalorder %s42, %s43
      %p54 = scmp.eq.s32.totalorder %s20, 0
      %p55 = por %p53, %p54
      %p56 = scmp.ne.s32.totalorder %s42, %s43
      %p57 = scmp.eq.s32.totalorder %s21, 1
      %p58 = por %p56, %p57
      %p60 = scmp.ne.s32.totalorder %s43, %s59
      %p61 = scmp.eq.s32.totalorder %s21, 0
      %p62 = por %p60, %p61
      %s64 = sadd.s32 %s63, 1
      %p67 = scmp.eq.s32.totalorder %s15, 1
      %p68 = scmp.ne.s32.totalorder %s63, %s65
      %p69 = scmp.eq.s32.totalorder %s15, 0
      %p70 = por %p68, %p69
      %p71 = scmp.ne.s32.totalorder %s63, %s65
      %p72 = scmp.eq.s32.totalorder %s20, 1
      %p73 = por %p71, %p72
      %p74 = scmp.ne.s32.totalorder %s65, %s66
      %p75 = scmp.eq.s32.totalorder %s20, 0
      %p76 = por %p74, %p75
      %p77 = scmp.ne.s32.totalorder %s65, %s66
      %p78 = scmp.eq.s32.totalorder %s21, 1
      %p79 = por %p77, %p78
      %p81 = scmp.ne.s32.totalorder %s66, %s80
      %p82 = scmp.eq.s32.totalorder %s21, 0
      %p83 = por %p81, %p82
      %s85 = sadd.s32 %s84, 1
      %p88 = scmp.eq.s32.totalorder %s15, 1
      %p89 = scmp.ne.s32.totalorder %s84, %s86
      %p90 = scmp.eq.s32.totalorder %s15, 0
      %p91 = por %p89, %p90
      %p92 = scmp.ne.s32.totalorder %s84, %s86
      %p93 = scmp.eq.s32.totalorder %s20, 1
      %p94 = por %p92, %p93
      %p95 = scmp.ne.s32.totalorder %s86, %s87
      %p96 = scmp.eq.s32.totalorder %s20, 0
      %p97 = por %p95, %p96
      %p98 = scmp.ne.s32.totalorder %s86, %s87
      %p99 = scmp.eq.s32.totalorder %s21, 1
      %p100 = por %p98, %p99
      %p102 = scmp.ne.s32.totalorder %s87, %s101
      %p103 = scmp.eq.s32.totalorder %s21, 0
      %p104 = por %p102, %p103
      %s105 = ssub.s32 %s22, %s34
      %s106 = ssub.s32 %s23, %s30
      %s107 = sor.u32 %s105, %s106
      %p108 = scmp.eq.s32.totalorder %s107, 0
      %s110 = sadd.s32 %s109, 1
      %s111 = scalar_select %p108, %s109, %s110
      %p114 = pneg %p108
      %p115 = scmp.eq.s32.totalorder %s15, 1
      %p116 = por %p114, %p115
      %p117 = scmp.ne.s32.totalorder %s109, %s112
      %p118 = scmp.eq.s32.totalorder %s15, 0
      %p119 = por %p117, %p118
      %p120 = scmp.ne.s32.totalorder %s109, %s112
      %p121 = scmp.eq.s32.totalorder %s20, 1
      %p122 = por %p120, %p121
      %p123 = scmp.ne.s32.totalorder %s112, %s113
      %p124 = scmp.eq.s32.totalorder %s20, 0
      %p125 = por %p123, %p124
      %p126 = scmp.ne.s32.totalorder %s112, %s113
      %p127 = scmp.eq.s32.totalorder %s21, 1
      %p128 = por %p126, %p127
      %p130 = scmp.ne.s32.totalorder %s113, %s129
      %p131 = scmp.eq.s32.totalorder %s21, 0
      %p132 = por %p130, %p131
      %p133 = scmp.le.s32.totalorder 1, %s15
      %p134 = scmp.lt.s32.totalorder %s15, 3
      %p135 = pnand %p133, %p134
      %p136 = pneg %p135
      // Predicated region
      $region9: #{tpu_custom_call.1} parent=5 // pred_check
        _
      $region10: #{tpu_custom_call.1} parent=5 // pred_check_branch
        %138 = sbr.rel (%p135) target = $region12
      $region11: #{tpu_custom_call.1} parent=5 // pred_region
        %s139 = ssub.s32 %s15, 1
        // Predicated region
        $region13: #{tpu_custom_call.1} parent=11 // pred_check
          %p140 = pneg %p76
        $region14: #{tpu_custom_call.1} parent=11 // pred_check_branch
          %142 = sbr.rel (%p140) target = $region16
        $region15: #{tpu_custom_call.1} parent=11 // pred_region
          _
        $region16: #{tpu_custom_call.1} parent=11 // pred_fallthru
          _
        // Predicated region
        $region17: #{tpu_custom_call.1} parent=11 // pred_check
          %p143 = pneg %p97
        $region18: #{tpu_custom_call.1} parent=11 // pred_check_branch
          %145 = sbr.rel (%p143) target = $region20
        $region19: #{tpu_custom_call.1} parent=11 // pred_region
          _
        $region20: #{tpu_custom_call.1} parent=11 // pred_fallthru
          _
      $region12: #{tpu_custom_call.1} parent=5 // pred_fallthru
        _
      %p146 = scmp.lt.s32.totalorder %s15, 2
      // Predicated region
      $region21: #{tpu_custom_call.1} parent=5 // pred_check
        %p147 = pneg %p146
      $region22: #{tpu_custom_call.1} parent=5 // pred_check_branch
        %149 = sbr.rel (%p147) target = $region24
      $region23: #{tpu_custom_call.1} parent=5 // pred_region
        // Predicated region
        $region25: #{tpu_custom_call.1} parent=23 // pred_check
          %p150 = pneg %p49
        $region26: #{tpu_custom_call.1} parent=23 // pred_check_branch
          %152 = sbr.rel (%p150) target = $region28
        $region27: #{tpu_custom_call.1} parent=23 // pred_region
          %s153 = sand.u32 %s39, 1
          %s154 = scalar_lea.sflag [#allocation3], %s153
          %s155 = sand.u32 %s39, 1
          %s156 = smul.addr %s155, 64
          %s157 = scalar_lea.vmem [#allocation2], %s156
          %s158 = smul.u32 8, %s23
          %s160 = ssub.s32 1024, 1024
          %161 = vsyncadd %s154, %s160
          %s162 = smul.addr %s22, 8
          %s163 = sadd.s32 %s158, %s162
          %s164 = smul.addr %s163, 128
          %s165 = scalar_lea.hbm %s0, %s164
          %s167 = sshll.u32 %s157, 4
          %s168 = int_to_ptr.vmem [resolvable:$true] %s167
          %170 = dma.hbm_to_vmem [thread:$0]  %s165, 1024, %s168, %s154
        $region28: #{tpu_custom_call.1} parent=23 // pred_fallthru
          _
      $region24: #{tpu_custom_call.1} parent=5 // pred_fallthru
        _
      %p171 = scmp.le.s32.totalorder 1, %s15
      %p172 = scmp.lt.s32.totalorder %s15, 3
      %p173 = pnand %p171, %p172
      %p174 = pneg %p173
      // Predicated region
      $region29: #{tpu_custom_call.1} parent=5 // pred_check
        _
      $region30: #{tpu_custom_call.1} parent=5 // pred_check_branch
        %176 = sbr.rel (%p173) target = $region32
      $region31: #{tpu_custom_call.1} parent=5 // pred_region
        %s177 = ssub.s32 %s15, 1
        %s178 = sand.u32 %s42, 1
        %s179 = scalar_lea.sflag [#allocation3], %s178
        %s180 = sand.u32 %s42, 1
        %s181 = smul.addr %s180, 64
        %s182 = scalar_lea.vmem [#allocation2], %s181
        // Predicated region
        $region33: #{tpu_custom_call.1} parent=31 // pred_check
          %p183 = pneg %p55
        $region34: #{tpu_custom_call.1} parent=31 // pred_check_branch
          %185 = sbr.rel (%p183) target = $region36
        $region35: #{tpu_custom_call.1} parent=31 // pred_region
          %186 = dma.done %s179, 1024
        $region36: #{tpu_custom_call.1} parent=31 // pred_fallthru
          _
        %s187 = sand.u32 %s42, 1
        %s188 = scalar_lea.sflag [#allocation3], %s187
        %s189 = sand.u32 %s42, 1
        %s190 = smul.addr %s189, 64
        %s191 = scalar_lea.vmem [#allocation2], %s190
        %p192 = pneg %p55
        %p193 = pneg %p52
        %p194 = pneg %p76
        %p195 = pneg %p73
        %p196 = pneg %p97
        %p197 = pneg %p94
        %p198 = pneg %p125
        %p199 = pneg %p122
        %s200 = sand.u32 %s112, 1
        %s201 = scalar_lea.sflag [#allocation4], %s200
        %s202 = sand.u32 %s112, 1
        %s203 = smul.addr %s202, 64
        %s204 = scalar_lea.vmem [#allocation5], %s203
        %s205 = smul.u32 8, %s25
        %s206 = smul.u32 8, %s25
        %v207 = vld [vmem:[%s182] sm:$0xff]
        %v208 = vld [vmem:[%s182 + $0x8] sm:$0xff]
        %v209 = vld [vmem:[%s182 + $0x10] sm:$0xff]
        %v210 = vld [vmem:[%s182 + $0x18] sm:$0xff]
        %v211 = vld [vmem:[%s182 + $0x20] sm:$0xff]
        %v212 = vld [vmem:[%s182 + $0x28] sm:$0xff]
        %v213 = vld [vmem:[%s182 + $0x30] sm:$0xff]
        %v214 = vld [vmem:[%s182 + $0x38] sm:$0xff]
        %v215 = vld [vmem:[%s1] sm:$0xff]
        %217 = vset.pattern.permute.xlu0 0
        %218 = vperm.xlu0 %217, %v215
        %v219 = vpop.permute.xlu0 %218
        %v221 = vmul.f32 %v207, %v219
        %v222 = vmul.f32 %v208, %v219
        %v223 = vmul.f32 %v209, %v219
        %v224 = vmul.f32 %v210, %v219
        %v225 = vmul.f32 %v211, %v219
        %v226 = vmul.f32 %v212, %v219
        %v227 = vmul.f32 %v213, %v219
        %v228 = vmul.f32 %v214, %v219
        %v229 = vld [vmem:[%s2] sm:$0xff]
        %231 = vset.pattern.permute.xlu0 0
        %232 = vperm.xlu0 %231, %v229
        %v233 = vpop.permute.xlu0 %232
        %v235 = vadd.f32 %v221, %v233
        %v236 = vadd.f32 %v222, %v233
        %v237 = vadd.f32 %v223, %v233
        %v238 = vadd.f32 %v224, %v233
        %v239 = vadd.f32 %v225, %v233
        %v240 = vadd.f32 %v226, %v233
        %v241 = vadd.f32 %v227, %v233
        %v242 = vadd.f32 %v228, %v233
        %243 = vst [vmem:[%s204] sm:$0xff] %v235
        %244 = vst [vmem:[%s204 + $0x8] sm:$0xff] %v236
        %245 = vst [vmem:[%s204 + $0x10] sm:$0xff] %v237
        %246 = vst [vmem:[%s204 + $0x18] sm:$0xff] %v238
        %247 = vst [vmem:[%s204 + $0x20] sm:$0xff] %v239
        %248 = vst [vmem:[%s204 + $0x28] sm:$0xff] %v240
        %249 = vst [vmem:[%s204 + $0x30] sm:$0xff] %v241
        %250 = vst [vmem:[%s204 + $0x38] sm:$0xff] %v242
        %s251 = sand.u32 %s112, 1
        %s252 = scalar_lea.sflag [#allocation4], %s251
        %s253 = sand.u32 %s112, 1
        %s254 = smul.addr %s253, 64
        %s255 = scalar_lea.vmem [#allocation5], %s254
        // Predicated region
        $region37: #{tpu_custom_call.1} parent=31 // pred_check
          %p256 = pneg %p122
        $region38: #{tpu_custom_call.1} parent=31 // pred_check_branch
          %258 = sbr.rel (%p256) target = $region40
        $region39: #{tpu_custom_call.1} parent=31 // pred_region
          %s259 = smul.u32 8, %s25
          %s261 = ssub.s32 1024, 1024
          %262 = vsyncadd %s252, %s261
          %s263 = smul.addr %s24, 8
          %s264 = sadd.s32 %s259, %s263
          %s265 = smul.addr %s264, 128
          %s266 = scalar_lea.hbm %s3, %s265
          %s268 = sshll.u32 %s255, 4
          %s269 = int_to_ptr.vmem [resolvable:$true] %s268
          %271 = dma.vmem_to_hbm [thread:$0]  %s269, 1024, %s266, %s252
        $region40: #{tpu_custom_call.1} parent=31 // pred_fallthru
          _
      $region32: #{tpu_custom_call.1} parent=5 // pred_fallthru
        _
      %p272 = scmp.le.s32.totalorder 2, %s15
      // Predicated region
      $region41: #{tpu_custom_call.1} parent=5 // pred_check
        %p273 = pneg %p272
      $region42: #{tpu_custom_call.1} parent=5 // pred_check_branch
        %275 = sbr.rel (%p273) target = $region44
      $region43: #{tpu_custom_call.1} parent=5 // pred_region
        %s276 = ssub.s32 %s15, 2
        // Predicated region
        $region45: #{tpu_custom_call.1} parent=43 // pred_check
          %p277 = pneg %p128
        $region46: #{tpu_custom_call.1} parent=43 // pred_check_branch
          %279 = sbr.rel (%p277) target = $region48
        $region47: #{tpu_custom_call.1} parent=43 // pred_region
          %s280 = sand.u32 %s113, 1
          %s281 = scalar_lea.sflag [#allocation4], %s280
          %s282 = sand.u32 %s113, 1
          %s283 = smul.addr %s282, 64
          %s284 = scalar_lea.vmem [#allocation5], %s283
          %285 = dma.done %s281, 1024
        $region48: #{tpu_custom_call.1} parent=43 // pred_fallthru
          _
      $region44: #{tpu_custom_call.1} parent=5 // pred_fallthru
        _
    $region6: #{tpu_custom_call.1} parent=1 // loop_footer
      %s19 = sadd.s32 1, %s15
    $region7: #{tpu_custom_call.1} parent=1 // loop_footer_branch
      %14 = sbr.rel target = $region3
    $region8: #{tpu_custom_call.1} parent=1 // loop_exit
      _
    %286 = vsyncpa [#allocation3], 1
    %s287 = scalar_lea.sflag [#allocation3], 1
    %288 = vsyncpa %s287, 1
    %289 = vsyncpa [#allocation4], 1
    %s290 = scalar_lea.sflag [#allocation4], 1
    %291 = vsyncpa %s290, 1

</llo_original>
